<compile_context>
chip_gen: v6e
topology: v6e:2x2x1
jax: 0.10.0
libtpu: 0.0.40
codegen_flags: <defaults>
</compile_context>

<pallas_src>
import functools

import jax
import jax.numpy as jnp
from jax import lax
from jax.experimental import pallas as pl
from jax.experimental.pallas import tpu as pltpu


def _ranking_loss_kernel(ri_ref, rs_ref, wi_ref, ws_ref, si_ref, ss_ref,
                         out_ref, *, margin, lambda1, lambda2,
                         batch, tile_b, needs_mask):
    f32 = jnp.float32
    eps2 = f32(1e-16)  # = (1e-8)**2, clamp applied to the squared norms

    ri = ri_ref[...].astype(f32)
    rs = rs_ref[...].astype(f32)
    wi = wi_ref[...].astype(f32)
    ws = ws_ref[...].astype(f32)
    si = si_ref[...].astype(f32)
    ss = ss_ref[...].astype(f32)

    def cosine(a, b):
        # per-row cosine similarity -> (TB, 1)
        dot = jnp.sum(a * b, axis=-1, keepdims=True)
        sa = jnp.sum(a * a, axis=-1, keepdims=True)
        sb = jnp.sum(b * b, axis=-1, keepdims=True)
        # max(sqrt(sa),eps) * max(sqrt(sb),eps) == sqrt(max(sa,eps^2)*max(sb,eps^2))
        return dot * lax.rsqrt(jnp.maximum(sa, eps2) * jnp.maximum(sb, eps2))

    right_scores = cosine(ri, rs)   # (TB, 1)
    wrong_scores = cosine(wi, ws)   # (TB, 1)
    synth_scores = cosine(si, ss)   # (TB, 1)

    d = ri - si
    synth_right_dist = jnp.sqrt(jnp.sum(d * d, axis=-1, keepdims=True))  # (TB, 1)

    zero = f32(0.0)
    m = f32(margin)
    synth_wrong_rank = jnp.maximum(zero, m - synth_scores + wrong_scores)
    right_wrong_rank = jnp.maximum(zero, m - right_scores + wrong_scores)
    right_synth_rank = jnp.maximum(zero, m - right_scores + synth_scores)

    if needs_mask:
        # Ragged last tile: drop contributions from padded rows.
        row = (lax.broadcasted_iota(jnp.int32, synth_wrong_rank.shape, 0)
               + pl.program_id(0) * tile_b)
        valid = row < batch
        synth_wrong_rank = jnp.where(valid, synth_wrong_rank, zero)
        right_wrong_rank = jnp.where(valid, right_wrong_rank, zero)
        right_synth_rank = jnp.where(valid, right_synth_rank, zero)
        synth_right_dist = jnp.where(valid, synth_right_dist, zero)

    # Combined reductions: one sum per column, weighted in scalar space.
    gen = jnp.sum(synth_wrong_rank) + f32(lambda2) * jnp.sum(synth_right_dist)
    dis = jnp.sum(right_wrong_rank) + f32(lambda1) * jnp.sum(right_synth_rank)

    out_ref[0, 0] = gen
    out_ref[0, 1] = dis


def _choose_tile_b(batch, dim, itemsize, budget_bytes=24 << 20):
    # 6 inputs x 2 pipeline buffers per tile must stay under `budget_bytes`
    # (safe for v7x's 64 MiB physical VMEM as well as v5e/v6e).
    tb = budget_bytes // (12 * dim * itemsize)
    tb = max(8, (tb // 8) * 8)
    tb = min(tb, 2048)
    if batch <= tb:
        return batch  # full-extent block: no (8,128) divisibility constraint
    return tb


def pairwise_ranking_loss(right_features, wrong_features, synthetic_features,
                          margin=0.2, lambda1=1.0, lambda2=1.0, tile_b=None):
    """right/wrong/synthetic_features: tuples (image_feats (B,D), sentence_feats (B,D))."""
    ri, rs = right_features
    wi, ws = wrong_features
    si, ss = synthetic_features
    B, D = ri.shape
    itemsize = jnp.dtype(ri.dtype).itemsize

    if tile_b is None:
        tb = _choose_tile_b(B, D, itemsize)
    else:
        tb = min(int(tile_b), B)
        if tb < B:
            tb = max(8, (tb // 8) * 8)
    num_tiles = pl.cdiv(B, tb)
    needs_mask = (B % tb) != 0

    kernel = functools.partial(
        _ranking_loss_kernel,
        margin=margin, lambda1=lambda1, lambda2=lambda2,
        batch=B, tile_b=tb, needs_mask=needs_mask)

    in_spec = pl.BlockSpec((tb, D), lambda i: (i, 0))
    # Per-tile scalar partials -> SMEM (avoids padded/masked VMEM stores).
    out_spec = pl.BlockSpec((1, 2), lambda i: (i, 0),
                            memory_space=pltpu.MemorySpace.SMEM)

    # 6 inputs x 2 pipeline buffers, plus margin for output/scratch.
    vmem_limit = int(min(12 * tb * D * itemsize + (4 << 20), 64 << 20))

    cost = pl.CostEstimate(
        flops=14 * B * D,                 # 3 cosines + 1 distance + hinges
        transcendentals=4 * B,            # 3 rsqrt + 1 sqrt per row
        bytes_accessed=6 * B * D * itemsize + num_tiles * 2 * 4,
    )

    partials = pl.pallas_call(
        kernel,
        out_shape=jax.ShapeDtypeStruct((num_tiles, 2), jnp.float32),
        grid=(num_tiles,),
        in_specs=[in_spec] * 6,
        out_specs=out_spec,
        compiler_params=pltpu.CompilerParams(
            dimension_semantics=("parallel",),   # shards tiles across v7x's 2 TCs
            vmem_limit_bytes=vmem_limit),
        cost_estimate=cost,
    )(ri, rs, wi, ws, si, ss)

    # TODO(synk): for very small D (<128) a lane-dense (D, B) layout would use
    # the full vreg; kept (B, D) to match the module's natural feature layout.
    gen = jnp.sum(partials[:, 0])
    dis = jnp.sum(partials[:, 1])
    return gen, dis


def _reference(right, wrong, synth, margin=0.2, lambda1=1.0, lambda2=1.0):
    # pure-JAX reference for sanity check
    def cosine(a, b):
        dot = jnp.sum(a * b, axis=-1)
        na = jnp.maximum(jnp.linalg.norm(a, axis=-1), 1e-8)
        nb = jnp.maximum(jnp.linalg.norm(b, axis=-1), 1e-8)
        return dot / (na * nb)

    ri, rs = right
    wi, ws = wrong
    si, ss = synth
    r = cosine(ri, rs)
    w = cosine(wi, ws)
    s = cosine(si, ss)
    sw = jnp.maximum(0.0, margin - s + w)
    srd = jnp.linalg.norm(ri - si, axis=-1)
    gen = jnp.sum(sw + lambda2 * srd)
    rw = jnp.maximum(0.0, margin - r + w)
    rsr = jnp.maximum(0.0, margin - r + s)
    dis = jnp.sum(rw + lambda1 * rsr)
    return gen, dis


def _make_inputs(key, B, D):
    keys = jax.random.split(key, 6)
    mk = lambda k: jax.random.normal(k, (B, D), jnp.float32)
    return ((mk(keys[0]), mk(keys[1])),
            (mk(keys[2]), mk(keys[3])),
            (mk(keys[4]), mk(keys[5])))


if __name__ == "__main__":
    key = jax.random.PRNGKey(0)

    # Test 1: small shapes matching the module (single full-batch tile).
    right, wrong, synth = _make_inputs(key, B=4, D=32)
    gen_loss, dis_loss = pairwise_ranking_loss(right, wrong, synth)
    jax.block_until_ready((gen_loss, dis_loss))
    gen_ref, dis_ref = _reference(right, wrong, synth)
    assert jnp.allclose(gen_loss, gen_ref, rtol=1e-4, atol=1e-4), (gen_loss, gen_ref)
    assert jnp.allclose(dis_loss, dis_ref, rtol=1e-4, atol=1e-4), (dis_loss, dis_ref)

    # Test 2: multi-tile grid with a ragged last tile (exercises pipelining + mask).
    right2, wrong2, synth2 = _make_inputs(jax.random.PRNGKey(1), B=20, D=32)
    gen2, dis2 = pairwise_ranking_loss(right2, wrong2, synth2, tile_b=8)
    jax.block_until_ready((gen2, dis2))
    gen2_ref, dis2_ref = _reference(right2, wrong2, synth2)
    assert jnp.allclose(gen2, gen2_ref, rtol=1e-4, atol=1e-4), (gen2, gen2_ref)
    assert jnp.allclose(dis2, dis2_ref, rtol=1e-4, atol=1e-4), (dis2, dis2_ref)

    print("KERNEL_OK")
</pallas_src>

<mosaic_0001>
module attributes {stable_mosaic.version = 11 : i64} {
  func.func @_ranking_loss_kernel(%arg0: i32, %arg1: memref<4x32xf32, #tpu.memory_space<vmem>>, %arg2: memref<4x32xf32, #tpu.memory_space<vmem>>, %arg3: memref<4x32xf32, #tpu.memory_space<vmem>>, %arg4: memref<4x32xf32, #tpu.memory_space<vmem>>, %arg5: memref<4x32xf32, #tpu.memory_space<vmem>>, %arg6: memref<4x32xf32, #tpu.memory_space<vmem>>, %arg7: memref<1x2xf32, #tpu.memory_space<smem>>) attributes {dimension_semantics = [#tpu.dimension_semantics<parallel>], iteration_bounds = array<i64: 1>, scalar_prefetch = 0 : i64, scratch_operands = 0 : i64, tpu.core_type = #tpu.core_type<tc>, window_params = [{transform_indices = @transform_0, window_bounds = array<i64: 4, 32>}, {transform_indices = @transform_1, window_bounds = array<i64: 4, 32>}, {transform_indices = @transform_2, window_bounds = array<i64: 4, 32>}, {transform_indices = @transform_3, window_bounds = array<i64: 4, 32>}, {transform_indices = @transform_4, window_bounds = array<i64: 4, 32>}, {transform_indices = @transform_5, window_bounds = array<i64: 4, 32>}, {transform_indices = @transform_6, window_bounds = array<i64: 1, 2>}]} {
    %c0 = arith.constant 0 : index
    %c0_0 = arith.constant 0 : index
    %0 = vector.load %arg1[%c0, %c0_0] : memref<4x32xf32, #tpu.memory_space<vmem>>, vector<4x32xf32>
    %c0_1 = arith.constant 0 : index
    %c0_2 = arith.constant 0 : index
    %1 = vector.load %arg2[%c0_1, %c0_2] : memref<4x32xf32, #tpu.memory_space<vmem>>, vector<4x32xf32>
    %c0_3 = arith.constant 0 : index
    %c0_4 = arith.constant 0 : index
    %2 = vector.load %arg3[%c0_3, %c0_4] : memref<4x32xf32, #tpu.memory_space<vmem>>, vector<4x32xf32>
    %c0_5 = arith.constant 0 : index
    %c0_6 = arith.constant 0 : index
    %3 = vector.load %arg4[%c0_5, %c0_6] : memref<4x32xf32, #tpu.memory_space<vmem>>, vector<4x32xf32>
    %c0_7 = arith.constant 0 : index
    %c0_8 = arith.constant 0 : index
    %4 = vector.load %arg5[%c0_7, %c0_8] : memref<4x32xf32, #tpu.memory_space<vmem>>, vector<4x32xf32>
    %c0_9 = arith.constant 0 : index
    %c0_10 = arith.constant 0 : index
    %5 = vector.load %arg6[%c0_9, %c0_10] : memref<4x32xf32, #tpu.memory_space<vmem>>, vector<4x32xf32>
    %6 = arith.mulf %0, %1 : vector<4x32xf32>
    %cst = arith.constant dense<0.000000e+00> : vector<4xf32>
    %7 = vector.multi_reduction <add>, %6, %cst [1] : vector<4x32xf32> to vector<4xf32>
    %8 = vector.shape_cast %7 : vector<4xf32> to vector<4x1xf32>
    %9 = arith.mulf %0, %0 : vector<4x32xf32>
    %cst_11 = arith.constant dense<0.000000e+00> : vector<4xf32>
    %10 = vector.multi_reduction <add>, %9, %cst_11 [1] : vector<4x32xf32> to vector<4xf32>
    %11 = vector.shape_cast %10 : vector<4xf32> to vector<4x1xf32>
    %12 = arith.mulf %1, %1 : vector<4x32xf32>
    %cst_12 = arith.constant dense<0.000000e+00> : vector<4xf32>
    %13 = vector.multi_reduction <add>, %12, %cst_12 [1] : vector<4x32xf32> to vector<4xf32>
    %14 = vector.shape_cast %13 : vector<4xf32> to vector<4x1xf32>
    %cst_13 = arith.constant 1.000000e-16 : f32
    %15 = vector.broadcast %cst_13 : f32 to vector<4x1xf32>
    %16 = arith.maximumf %11, %15 : vector<4x1xf32>
    %cst_14 = arith.constant 1.000000e-16 : f32
    %17 = vector.broadcast %cst_14 : f32 to vector<4x1xf32>
    %18 = arith.maximumf %14, %17 : vector<4x1xf32>
    %19 = arith.mulf %16, %18 : vector<4x1xf32>
    %20 = math.rsqrt %19 : vector<4x1xf32>
    %21 = arith.mulf %8, %20 : vector<4x1xf32>
    %22 = arith.mulf %2, %3 : vector<4x32xf32>
    %cst_15 = arith.constant dense<0.000000e+00> : vector<4xf32>
    %23 = vector.multi_reduction <add>, %22, %cst_15 [1] : vector<4x32xf32> to vector<4xf32>
    %24 = vector.shape_cast %23 : vector<4xf32> to vector<4x1xf32>
    %25 = arith.mulf %2, %2 : vector<4x32xf32>
    %cst_16 = arith.constant dense<0.000000e+00> : vector<4xf32>
    %26 = vector.multi_reduction <add>, %25, %cst_16 [1] : vector<4x32xf32> to vector<4xf32>
    %27 = vector.shape_cast %26 : vector<4xf32> to vector<4x1xf32>
    %28 = arith.mulf %3, %3 : vector<4x32xf32>
    %cst_17 = arith.constant dense<0.000000e+00> : vector<4xf32>
    %29 = vector.multi_reduction <add>, %28, %cst_17 [1] : vector<4x32xf32> to vector<4xf32>
    %30 = vector.shape_cast %29 : vector<4xf32> to vector<4x1xf32>
    %cst_18 = arith.constant 1.000000e-16 : f32
    %31 = vector.broadcast %cst_18 : f32 to vector<4x1xf32>
    %32 = arith.maximumf %27, %31 : vector<4x1xf32>
    %cst_19 = arith.constant 1.000000e-16 : f32
    %33 = vector.broadcast %cst_19 : f32 to vector<4x1xf32>
    %34 = arith.maximumf %30, %33 : vector<4x1xf32>
    %35 = arith.mulf %32, %34 : vector<4x1xf32>
    %36 = math.rsqrt %35 : vector<4x1xf32>
    %37 = arith.mulf %24, %36 : vector<4x1xf32>
    %38 = arith.mulf %4, %5 : vector<4x32xf32>
    %cst_20 = arith.constant dense<0.000000e+00> : vector<4xf32>
    %39 = vector.multi_reduction <add>, %38, %cst_20 [1] : vector<4x32xf32> to vector<4xf32>
    %40 = vector.shape_cast %39 : vector<4xf32> to vector<4x1xf32>
    %41 = arith.mulf %4, %4 : vector<4x32xf32>
    %cst_21 = arith.constant dense<0.000000e+00> : vector<4xf32>
    %42 = vector.multi_reduction <add>, %41, %cst_21 [1] : vector<4x32xf32> to vector<4xf32>
    %43 = vector.shape_cast %42 : vector<4xf32> to vector<4x1xf32>
    %44 = arith.mulf %5, %5 : vector<4x32xf32>
    %cst_22 = arith.constant dense<0.000000e+00> : vector<4xf32>
    %45 = vector.multi_reduction <add>, %44, %cst_22 [1] : vector<4x32xf32> to vector<4xf32>
    %46 = vector.shape_cast %45 : vector<4xf32> to vector<4x1xf32>
    %cst_23 = arith.constant 1.000000e-16 : f32
    %47 = vector.broadcast %cst_23 : f32 to vector<4x1xf32>
    %48 = arith.maximumf %43, %47 : vector<4x1xf32>
    %cst_24 = arith.constant 1.000000e-16 : f32
    %49 = vector.broadcast %cst_24 : f32 to vector<4x1xf32>
    %50 = arith.maximumf %46, %49 : vector<4x1xf32>
    %51 = arith.mulf %48, %50 : vector<4x1xf32>
    %52 = math.rsqrt %51 : vector<4x1xf32>
    %53 = arith.mulf %40, %52 : vector<4x1xf32>
    %54 = arith.subf %0, %4 : vector<4x32xf32>
    %55 = arith.mulf %54, %54 : vector<4x32xf32>
    %cst_25 = arith.constant dense<0.000000e+00> : vector<4xf32>
    %56 = vector.multi_reduction <add>, %55, %cst_25 [1] : vector<4x32xf32> to vector<4xf32>
    %57 = vector.shape_cast %56 : vector<4xf32> to vector<4x1xf32>
    %58 = math.sqrt %57 : vector<4x1xf32>
    %cst_26 = arith.constant 2.000000e-01 : f32
    %59 = vector.broadcast %cst_26 : f32 to vector<4x1xf32>
    %60 = arith.subf %59, %53 : vector<4x1xf32>
    %61 = arith.addf %60, %37 : vector<4x1xf32>
    %cst_27 = arith.constant 0.000000e+00 : f32
    %62 = vector.broadcast %cst_27 : f32 to vector<4x1xf32>
    %63 = arith.maximumf %62, %61 : vector<4x1xf32>
    %cst_28 = arith.constant 2.000000e-01 : f32
    %64 = vector.broadcast %cst_28 : f32 to vector<4x1xf32>
    %65 = arith.subf %64, %21 : vector<4x1xf32>
    %66 = arith.addf %65, %37 : vector<4x1xf32>
    %cst_29 = arith.constant 0.000000e+00 : f32
    %67 = vector.broadcast %cst_29 : f32 to vector<4x1xf32>
    %68 = arith.maximumf %67, %66 : vector<4x1xf32>
    %cst_30 = arith.constant 2.000000e-01 : f32
    %69 = vector.broadcast %cst_30 : f32 to vector<4x1xf32>
    %70 = arith.subf %69, %21 : vector<4x1xf32>
    %71 = arith.addf %70, %53 : vector<4x1xf32>
    %cst_31 = arith.constant 0.000000e+00 : f32
    %72 = vector.broadcast %cst_31 : f32 to vector<4x1xf32>
    %73 = arith.maximumf %72, %71 : vector<4x1xf32>
    %74 = vector.shape_cast %63 : vector<4x1xf32> to vector<1x4x1xf32>
    %cst_32 = arith.constant dense<0.000000e+00> : vector<1xf32>
    %75 = vector.multi_reduction <add>, %74, %cst_32 [1, 2] : vector<1x4x1xf32> to vector<1xf32>
    %76 = vector.shape_cast %75 : vector<1xf32> to vector<1x1x1xf32>
    %77 = vector.extract %76[0, 0, 0] : f32 from vector<1x1x1xf32>
    %78 = vector.shape_cast %58 : vector<4x1xf32> to vector<1x4x1xf32>
    %cst_33 = arith.constant dense<0.000000e+00> : vector<1xf32>
    %79 = vector.multi_reduction <add>, %78, %cst_33 [1, 2] : vector<1x4x1xf32> to vector<1xf32>
    %80 = vector.shape_cast %79 : vector<1xf32> to vector<1x1x1xf32>
    %81 = vector.extract %80[0, 0, 0] : f32 from vector<1x1x1xf32>
    %cst_34 = arith.constant 1.000000e+00 : f32
    %82 = arith.mulf %cst_34, %81 : f32
    %83 = arith.addf %77, %82 : f32
    %84 = vector.shape_cast %68 : vector<4x1xf32> to vector<1x4x1xf32>
    %cst_35 = arith.constant dense<0.000000e+00> : vector<1xf32>
    %85 = vector.multi_reduction <add>, %84, %cst_35 [1, 2] : vector<1x4x1xf32> to vector<1xf32>
    %86 = vector.shape_cast %85 : vector<1xf32> to vector<1x1x1xf32>
    %87 = vector.extract %86[0, 0, 0] : f32 from vector<1x1x1xf32>
    %88 = vector.shape_cast %73 : vector<4x1xf32> to vector<1x4x1xf32>
    %cst_36 = arith.constant dense<0.000000e+00> : vector<1xf32>
    %89 = vector.multi_reduction <add>, %88, %cst_36 [1, 2] : vector<1x4x1xf32> to vector<1xf32>
    %90 = vector.shape_cast %89 : vector<1xf32> to vector<1x1x1xf32>
    %91 = vector.extract %90[0, 0, 0] : f32 from vector<1x1x1xf32>
    %cst_37 = arith.constant 1.000000e+00 : f32
    %92 = arith.mulf %cst_37, %91 : f32
    %93 = arith.addf %87, %92 : f32
    %c0_38 = arith.constant 0 : index
    %c0_39 = arith.constant 0 : index
    %94 = memref.load %arg7[%c0_38, %c0_39] : memref<1x2xf32, #tpu.memory_space<smem>>
    memref.store %83, %arg7[%c0_38, %c0_39] : memref<1x2xf32, #tpu.memory_space<smem>>
    %c0_40 = arith.constant 0 : index
    %c1 = arith.constant 1 : index
    %95 = memref.load %arg7[%c0_40, %c1] : memref<1x2xf32, #tpu.memory_space<smem>>
    memref.store %93, %arg7[%c0_40, %c1] : memref<1x2xf32, #tpu.memory_space<smem>>
    return
  }
  func.func @transform_0(%arg0: i32) -> (i32, i32) {
    %c0_i32 = arith.constant 0 : i32
    %c0_i32_0 = arith.constant 0 : i32
    return %arg0, %c0_i32 : i32, i32
  }
  func.func @transform_1(%arg0: i32) -> (i32, i32) {
    %c0_i32 = arith.constant 0 : i32
    %c0_i32_0 = arith.constant 0 : i32
    return %arg0, %c0_i32 : i32, i32
  }
  func.func @transform_2(%arg0: i32) -> (i32, i32) {
    %c0_i32 = arith.constant 0 : i32
    %c0_i32_0 = arith.constant 0 : i32
    return %arg0, %c0_i32 : i32, i32
  }
  func.func @transform_3(%arg0: i32) -> (i32, i32) {
    %c0_i32 = arith.constant 0 : i32
    %c0_i32_0 = arith.constant 0 : i32
    return %arg0, %c0_i32 : i32, i32
  }
  func.func @transform_4(%arg0: i32) -> (i32, i32) {
    %c0_i32 = arith.constant 0 : i32
    %c0_i32_0 = arith.constant 0 : i32
    return %arg0, %c0_i32 : i32, i32
  }
  func.func @transform_5(%arg0: i32) -> (i32, i32) {
    %c0_i32 = arith.constant 0 : i32
    %c0_i32_0 = arith.constant 0 : i32
    return %arg0, %c0_i32 : i32, i32
  }
  func.func @transform_6(%arg0: i32) -> (i32, i32) {
    %c0_i32 = arith.constant 0 : i32
    %c0_i32_0 = arith.constant 0 : i32
    return %arg0, %c0_i32 : i32, i32
  }
}

</mosaic_0001>

<llo_original>
// kernel: tpu_custom_call.1
$region0: #{tpu_custom_call.1}
  #allocation0 [shape = 'u32[]', space=smem, size = 0x4, offset = 0x4, fixed_abs, tag = 'smem constant byte address 0x4 - core index']
  #allocation1 [shape = 'u32[144,128]{1,0:T(1,128)}', space=vmem, size = 0x12000, scoped, tag = 'internal scratch']
  %s0 = inlined_call_operand.hbm [shape: f32[4,32], index: 0, kind: input, shape index: {}]
  %s1 = inlined_call_operand.hbm [shape: f32[4,32], index: 1, kind: input, shape index: {}]
  %s2 = inlined_call_operand.hbm [shape: f32[4,32], index: 2, kind: input, shape index: {}]
  %s3 = inlined_call_operand.vmem [shape: f32[4,32], index: 3, kind: input, shape index: {}]
  %s4 = inlined_call_operand.hbm [shape: f32[4,32], index: 4, kind: input, shape index: {}]
  %s5 = inlined_call_operand.vmem [shape: f32[4,32], index: 5, kind: input, shape index: {}]
  %s6 = inlined_call_operand.hbm [shape: f32[1,2], index: 6, kind: output, shape index: {}]
  %s7 = sld [smem:[#allocation0]]
  $region50: #{tpu_custom_call.1} parent=0
    _
  %s9 = ssub.s32 1, %s7
  %s10 = scalar_select 0, %s9, %s7
  $region1: #{tpu_custom_call.1} parent=0
    #allocation2 [shape = 'u8[2048]{0}', space=vmem, size = 0x800, scoped, tag = 'input window, operand 0, single buffered']
    #allocation3 [shape = 's32[1]{0}', space=sflag, size = 0x4, scoped, tag = 'scoped memory for tpu_custom_call.1']
    #allocation4 [shape = 's32[1]{0}', space=sflag, size = 0x4, scoped, tag = 'scoped memory for tpu_custom_call.1']
    #allocation5 [shape = 'u8[2048]{0}', space=vmem, size = 0x800, scoped, tag = 'input window, operand 1, single buffered']
    #allocation6 [shape = 's32[1]{0}', space=sflag, size = 0x4, scoped, tag = 'scoped memory for tpu_custom_call.1']
    #allocation7 [shape = 'u8[2048]{0}', space=vmem, size = 0x800, scoped, tag = 'input window, operand 2, single buffered']
    #allocation8 [shape = 'u8[2048]{0}', space=vmem, size = 0x800, scoped, tag = 'input window, operand 4, single buffered']
    #allocation9 [shape = 's32[1]{0}', space=sflag, size = 0x4, scoped, tag = 'scoped memory for tpu_custom_call.1']
    #allocation10 [shape = 'u8[512]{0}', space=smem, size = 0x200, scoped, tag = 'output window, operand 0, single buffered']
    %11 = vsyncpa [#allocation3], 0
    %12 = vsyncpa [#allocation6], 0
    %13 = vsyncpa [#allocation9], 0
    %14 = vsyncpa [#allocation4], 0
    // Predicated region
    $region2: #{tpu_custom_call.1} parent=1 // pred_check
      _
    $region3: #{tpu_custom_call.1} parent=1 // pred_check_branch
      %16 = sbr.rel (0) target = $region5
    $region4: #{tpu_custom_call.1} parent=1 // pred_region
      %s18 = ssub.s32 64, 64
      %19 = vsyncadd [#allocation3], %s18
      %s21 = sshll.u32 [#allocation2], 4
      %s22 = int_to_ptr.vmem [resolvable:$true] %s21
      %24 = dma.hbm_to_vmem [thread:$0]  %s0, 64, %s22, [#allocation3]
    $region5: #{tpu_custom_call.1} parent=1 // pred_fallthru
      _
    // Predicated region
    $region6: #{tpu_custom_call.1} parent=1 // pred_check
      _
    $region7: #{tpu_custom_call.1} parent=1 // pred_check_branch
      %26 = sbr.rel (0) target = $region9
    $region8: #{tpu_custom_call.1} parent=1 // pred_region
      %s28 = ssub.s32 64, 64
      %29 = vsyncadd [#allocation6], %s28
      %s31 = sshll.u32 [#allocation5], 4
      %s32 = int_to_ptr.vmem [resolvable:$true] %s31
      %34 = dma.hbm_to_vmem [thread:$0]  %s1, 64, %s32, [#allocation6]
    $region9: #{tpu_custom_call.1} parent=1 // pred_fallthru
      _
    // Predicated region
    $region10: #{tpu_custom_call.1} parent=1 // pred_check
      _
    $region11: #{tpu_custom_call.1} parent=1 // pred_check_branch
      %36 = sbr.rel (0) target = $region13
    $region12: #{tpu_custom_call.1} parent=1 // pred_region
      %s38 = ssub.s32 64, 64
      %39 = vsyncadd [#allocation6], %s38
      %s41 = sshll.u32 [#allocation7], 4
      %s42 = int_to_ptr.vmem [resolvable:$true] %s41
      %44 = dma.hbm_to_vmem [thread:$0]  %s2, 64, %s42, [#allocation6]
    $region13: #{tpu_custom_call.1} parent=1 // pred_fallthru
      _
    // Predicated region
    $region14: #{tpu_custom_call.1} parent=1 // pred_check
      _
    $region15: #{tpu_custom_call.1} parent=1 // pred_check_branch
      %46 = sbr.rel (0) target = $region17
    $region16: #{tpu_custom_call.1} parent=1 // pred_region
      _
    $region17: #{tpu_custom_call.1} parent=1 // pred_fallthru
      _
    // Predicated region
    $region18: #{tpu_custom_call.1} parent=1 // pred_check
      _
    $region19: #{tpu_custom_call.1} parent=1 // pred_check_branch
      %48 = sbr.rel (0) target = $region21
    $region20: #{tpu_custom_call.1} parent=1 // pred_region
      %s50 = ssub.s32 64, 64
      %51 = vsyncadd [#allocation9], %s50
      %s53 = sshll.u32 [#allocation8], 4
      %s54 = int_to_ptr.vmem [resolvable:$true] %s53
      %56 = dma.hbm_to_vmem [thread:$0]  %s4, 64, %s54, [#allocation9]
    $region21: #{tpu_custom_call.1} parent=1 // pred_fallthru
      _
    // Predicated region
    $region22: #{tpu_custom_call.1} parent=1 // pred_check
      _
    $region23: #{tpu_custom_call.1} parent=1 // pred_check_branch
      %58 = sbr.rel (0) target = $region25
    $region24: #{tpu_custom_call.1} parent=1 // pred_region
      _
    $region25: #{tpu_custom_call.1} parent=1 // pred_fallthru
      _
    // Predicated region
    $region26: #{tpu_custom_call.1} parent=1 // pred_check
      _
    $region27: #{tpu_custom_call.1} parent=1 // pred_check_branch
      %60 = sbr.rel (0) target = $region29
    $region28: #{tpu_custom_call.1} parent=1 // pred_region
      %61 = dma.done [#allocation3], 64
    $region29: #{tpu_custom_call.1} parent=1 // pred_fallthru
      _
    // Predicated region
    $region30: #{tpu_custom_call.1} parent=1 // pred_check
      _
    $region31: #{tpu_custom_call.1} parent=1 // pred_check_branch
      %63 = sbr.rel (0) target = $region33
    $region32: #{tpu_custom_call.1} parent=1 // pred_region
      %64 = dma.done [#allocation6], 64
    $region33: #{tpu_custom_call.1} parent=1 // pred_fallthru
      _
    // Predicated region
    $region34: #{tpu_custom_call.1} parent=1 // pred_check
      _
    $region35: #{tpu_custom_call.1} parent=1 // pred_check_branch
      %66 = sbr.rel (0) target = $region37
    $region36: #{tpu_custom_call.1} parent=1 // pred_region
      %67 = dma.done [#allocation6], 64
    $region37: #{tpu_custom_call.1} parent=1 // pred_fallthru
      _
    // Predicated region
    $region38: #{tpu_custom_call.1} parent=1 // pred_check
      _
    $region39: #{tpu_custom_call.1} parent=1 // pred_check_branch
      %69 = sbr.rel (0) target = $region41
    $region40: #{tpu_custom_call.1} parent=1 // pred_region
      %70 = dma.done [#allocation9], 64
    $region41: #{tpu_custom_call.1} parent=1 // pred_fallthru
      _
    %v71 = vld [vmem:[#allocation2] sm:$0xf]
    %v72 = vld [vmem:[#allocation5] sm:$0xf]
    %v73 = vld [vmem:[#allocation7] sm:$0xf]
    %v74 = vld [vmem:[%s3] sm:$0xf]
    %v75 = vld [vmem:[#allocation8] sm:$0xf]
    %v76 = vld [vmem:[%s5] sm:$0xf]
    %v77 = vmul.f32 %v71, %v72
    %vm78 = vcmask 257024
    %v79 = vsel %vm78, %v77, 0.0
    %80 = vadd.xlane.f32.xlu0 %v79
    %v81 = vpop.xlane.xlu0 %80
    %v82 = vmul.f32 %v71, %v71
    %v83 = vsel %vm78, %v82, 0.0
    %84 = vadd.xlane.f32.xlu0 %v83
    %v85 = vpop.xlane.xlu0 %84
    %v86 = vmul.f32 %v72, %v72
    %v87 = vsel %vm78, %v86, 0.0
    %88 = vadd.xlane.f32.xlu0 %v87
    %v89 = vpop.xlane.xlu0 %88
    %v90 = vmax.f32 %v85, 1e-16
    %v91 = vmax.f32 %v89, 1e-16
    %v92 = vmul.f32 %v90, %v91
    %v93 = vrsqrt.pop %v92
    %v94 = vmul.f32 %v81, %v93
    %v95 = vmul.f32 %v73, %v74
    %v96 = vsel %vm78, %v95, 0.0
    %97 = vadd.xlane.f32.xlu0 %v96
    %v98 = vpop.xlane.xlu0 %97
    %v99 = vmul.f32 %v73, %v73
    %v100 = vsel %vm78, %v99, 0.0
    %101 = vadd.xlane.f32.xlu0 %v100
    %v102 = vpop.xlane.xlu0 %101
    %v103 = vmul.f32 %v74, %v74
    %v104 = vsel %vm78, %v103, 0.0
    %105 = vadd.xlane.f32.xlu0 %v104
    %v106 = vpop.xlane.xlu0 %105
    %v107 = vmax.f32 %v102, 1e-16
    %v108 = vmax.f32 %v106, 1e-16
    %v109 = vmul.f32 %v107, %v108
    %v110 = vrsqrt.pop %v109
    %v111 = vmul.f32 %v98, %v110
    %v112 = vmul.f32 %v75, %v76
    %v113 = vsel %vm78, %v112, 0.0
    %114 = vadd.xlane.f32.xlu0 %v113
    %v115 = vpop.xlane.xlu0 %114
    %v116 = vmul.f32 %v75, %v75
    %v117 = vsel %vm78, %v116, 0.0
    %118 = vadd.xlane.f32.xlu0 %v117
    %v119 = vpop.xlane.xlu0 %118
    %v120 = vmul.f32 %v76, %v76
    %v121 = vsel %vm78, %v120, 0.0
    %122 = vadd.xlane.f32.xlu0 %v121
    %v123 = vpop.xlane.xlu0 %122
    %v124 = vmax.f32 %v119, 1e-16
    %v125 = vmax.f32 %v123, 1e-16
    %v126 = vmul.f32 %v124, %v125
    %v127 = vrsqrt.pop %v126
    %v128 = vmul.f32 %v115, %v127
    %v129 = vsub.f32 %v71, %v75
    %v130 = vmul.f32 %v129, %v129
    %v131 = vsel %vm78, %v130, 0.0
    %132 = vadd.xlane.f32.xlu0 %v131
    %v133 = vpop.xlane.xlu0 %132
    %v134 = vrsqrt.pop %v133
    %v135 = vmul.f32 %v133, %v134
    %vm136 = vcmp.eq.f32.partialorder %v133, inf
    %v137 = vsel %vm136, %v133, %v135
    %vm138 = vcmp.eq.f32.partialorder %v133, 0.0
    %v139 = vand.u32 %v133, 2147483648
    %v140 = vsel %vm138, %v139, %v137
    %v141 = vsub.f32 0.2, %v128
    %v142 = vadd.f32 %v141, %v111
    %v143 = vmax.f32 %v142, 0.0
    %v144 = vsub.f32 0.2, %v94
    %v145 = vadd.f32 %v144, %v111
    %v146 = vmax.f32 %v145, 0.0
    %v147 = vadd.f32 %v144, %v128
    %v148 = vmax.f32 %v147, 0.0
    %vm149 = vcmask 3072
    %v150 = vsel %vm149, %v143, 0.0
    %151 = vadd.xlane.f32.xlu0 %v150
    %v152 = vpop.xlane.xlu0 %151
    %v153 = vrot.slane %v152, 4
    %v154 = vadd.f32 %v152, %v153
    %v155 = vrot.slane %v154, 2
    %v156 = vadd.f32 %v154, %v155
    %v157 = vrot.slane %v156, 1
    %v158 = vadd.f32 %v156, %v157
    %s159 = vtos %v158
    %v160 = vsel %vm149, %v140, 0.0
    %161 = vadd.xlane.f32.xlu0 %v160
    %v162 = vpop.xlane.xlu0 %161
    %v163 = vrot.slane %v162, 4
    %v164 = vadd.f32 %v162, %v163
    %v165 = vrot.slane %v164, 2
    %v166 = vadd.f32 %v164, %v165
    %v167 = vrot.slane %v166, 1
    %v168 = vadd.f32 %v166, %v167
    %s169 = vtos %v168
    %s170 = sadd.f32 %s159, %s169
    %v171 = vsel %vm149, %v146, 0.0
    %172 = vadd.xlane.f32.xlu0 %v171
    %v173 = vpop.xlane.xlu0 %172
    %v174 = vrot.slane %v173, 4
    %v175 = vadd.f32 %v173, %v174
    %v176 = vrot.slane %v175, 2
    %v177 = vadd.f32 %v175, %v176
    %v178 = vrot.slane %v177, 1
    %v179 = vadd.f32 %v177, %v178
    %s180 = vtos %v179
    %v181 = vsel %vm149, %v148, 0.0
    %182 = vadd.xlane.f32.xlu0 %v181
    %v183 = vpop.xlane.xlu0 %182
    %v184 = vrot.slane %v183, 4
    %v185 = vadd.f32 %v183, %v184
    %v186 = vrot.slane %v185, 2
    %v187 = vadd.f32 %v185, %v186
    %v188 = vrot.slane %v187, 1
    %v189 = vadd.f32 %v187, %v188
    %s190 = vtos %v189
    %s191 = sadd.f32 %s180, %s190
    %s192 = scalar_lea.smem [#allocation10], 0
    %193 = sst [smem:[%s192]] %s170
    %s194 = scalar_lea.smem [#allocation10], 1
    %195 = sst [smem:[%s194]] %s191
    // Predicated region
    $region42: #{tpu_custom_call.1} parent=1 // pred_check
      _
    $region43: #{tpu_custom_call.1} parent=1 // pred_check_branch
      %197 = sbr.rel (0) target = $region45
    $region44: #{tpu_custom_call.1} parent=1 // pred_region
      %s199 = ssub.s32 16, 16
      %200 = vsyncadd [#allocation4], %s199
      %203 = dma.smem_to_hbm [#allocation10], 16, %s6, [#allocation4]
    $region45: #{tpu_custom_call.1} parent=1 // pred_fallthru
      _
    // Predicated region
    $region46: #{tpu_custom_call.1} parent=1 // pred_check
      _
    $region47: #{tpu_custom_call.1} parent=1 // pred_check_branch
      %205 = sbr.rel (0) target = $region49
    $region48: #{tpu_custom_call.1} parent=1 // pred_region
      %206 = dma.done [#allocation4], 16
    $region49: #{tpu_custom_call.1} parent=1 // pred_fallthru
      _
    %207 = sfence
    %208 = vsyncpa [#allocation3], 1
    %209 = vsyncpa [#allocation6], 1
    %210 = vsyncpa [#allocation9], 1
    %211 = vsyncpa [#allocation4], 1

</llo_original>
